<compile_context>
chip_gen: v7x
topology: tpu7x:2x2x1
jax: 0.10.0
libtpu: 0.0.40
codegen_flags: <defaults>
</compile_context>

<pallas_src>
import math

import jax
import jax.numpy as jnp
from jax.experimental import pallas as pl
from jax.experimental.pallas import tpu as pltpu


_CROP_LO, _CROP_HI = 2, 6      # x[:, :, 2:6, 2:6] when spatial < 16
_MXU_MIN_CIN = 16              # below this an unrolled VPU FMA chain beats the MXU


def _make_adjust_kernel(n, cin, cout, crop):
    """Builds the fused (optional crop) + 1x1-conv + BN kernel body.

    Refs:
      x_ref:     (N, Cin, H, W)  if crop else (N, Cin, H*W), f32
      w_ref:     (Cout, Cin)     f32, BN scale already folded in
      shift_ref: (Cout, 1, 1)    if crop else (Cout, 1), folded BN shift, f32
      o_ref:     (N, Cout, 4, 4) if crop else (N, Cout, H*W)
    """
    use_mxu = (not crop) and (cin >= _MXU_MIN_CIN)

    def kernel(x_ref, w_ref, shift_ref, o_ref):
        w = w_ref[...]            # (Cout, Cin), stays resident for all images
        shift = shift_ref[...]
        for i in range(n):        # static unroll over batch: one invocation total
            if crop:
                # In-kernel static crop; exact pre-conv because the conv is 1x1.
                xi = x_ref[i][:, _CROP_LO:_CROP_HI, _CROP_LO:_CROP_HI]  # (Cin,4,4)
                # VPU contraction: sum_c w[:,c] * x[c,:,:]  (tiny tiles, no MXU).
                acc = w[:, 0:1, None] * xi[0:1]
                for c in range(1, cin):
                    acc = acc + w[:, c:c + 1, None] * xi[c:c + 1]
            else:
                xi = x_ref[i]                              # (Cin, P), P = H*W on lanes
                if use_mxu:
                    # Wide-channel case: MXU dot, f32 accumulation.
                    acc = jnp.dot(w, xi, preferred_element_type=jnp.float32)
                else:
                    # Tiny K: unrolled broadcast-multiply-add chain on the VPU.
                    acc = w[:, 0:1] * xi[0:1]
                    for c in range(1, cin):
                        acc = acc + w[:, c:c + 1] * xi[c:c + 1]
            o_ref[i] = (acc + shift).astype(o_ref.dtype)

    return kernel


def _conv1x1_bn_fused(x_nchw, w_oi, scale, shift, *, crop):
    """(optional crop) + 1x1 conv (bias-free) + folded BatchNorm in one pallas_call."""
    n, cin, h, wdt = x_nchw.shape
    cout = w_oi.shape[0]

    # Fold the BN scale into the conv weight (constant-folded by XLA, outside
    # the hot path). Only the shift is passed into the kernel. f32 throughout.
    w_scaled = (w_oi * scale[:, None]).astype(jnp.float32)          # (Cout, Cin)

    if crop:
        ho = wo = _CROP_HI - _CROP_LO                                # 4
        x_in = x_nchw                                                # whole (N,Cin,H,W)
        shift_b = shift.reshape(cout, 1, 1).astype(jnp.float32)
        out_shape = (n, cout, ho, wo)
    else:
        ho, wo = h, wdt
        # NCHW is channel-major: merging trailing dims is a free reshape, and it
        # puts H*W on lanes (lane-dense loads/stores).
        x_in = x_nchw.reshape(n, cin, h * wdt)
        shift_b = shift.reshape(cout, 1).astype(jnp.float32)
        out_shape = (n, cout, h * wdt)

    kernel = _make_adjust_kernel(n, cin, cout, crop)

    cost = pl.CostEstimate(
        flops=2 * n * cout * cin * ho * wo,
        transcendentals=0,
        bytes_accessed=4 * (x_in.size + w_scaled.size + shift_b.size
                            + math.prod(out_shape)),
    )

    out = pl.pallas_call(
        kernel,
        out_shape=jax.ShapeDtypeStruct(out_shape, x_nchw.dtype),
        # Single invocation (no grid): whole arrays live in VMEM for the call.
        in_specs=[pl.BlockSpec(memory_space=pltpu.MemorySpace.VMEM)] * 3,
        out_specs=pl.BlockSpec(memory_space=pltpu.MemorySpace.VMEM),
        cost_estimate=cost,
    )(x_in, w_scaled, shift_b)

    return out if crop else out.reshape(n, cout, h, wdt)


def make_adjust_layer_params(in_channels, out_channels, key):
    """Deterministic synthetic parameters (conv weight + BN stats/affine)."""
    k_w, k_g, k_b, k_m, k_v = jax.random.split(key, 5)
    conv_w = jax.random.normal(k_w, (out_channels, in_channels, 1, 1),
                               jnp.float32) * 0.1
    bn_gamma = 1.0 + 0.1 * jax.random.normal(k_g, (out_channels,), jnp.float32)
    bn_beta = 0.1 * jax.random.normal(k_b, (out_channels,), jnp.float32)
    bn_mean = 0.1 * jax.random.normal(k_m, (out_channels,), jnp.float32)
    bn_var = jnp.abs(jax.random.normal(k_v, (out_channels,), jnp.float32)) + 0.5
    return dict(conv_w=conv_w, gamma=bn_gamma, beta=bn_beta,
                mean=bn_mean, var=bn_var)


def adjust_layer_forward(x_nchw, params, in_channels, out_channels, eps=1e-5):
    # The 1x1 / stride-1 / unpadded conv keeps the spatial size, so PyTorch's
    # post-conv `x.size(3) < 16` check is equivalent evaluated on the input,
    # and cropping before the conv is mathematically identical.
    crop = x_nchw.shape[3] < 16
    if in_channels != out_channels:
        conv_w = params["conv_w"]
        assert conv_w.shape[2:] == (1, 1), \
            "AdjustLayer kernel assumes a 1x1, stride-1, unpadded conv"
        scale = params["gamma"] * jax.lax.rsqrt(params["var"] + eps)
        shift = params["beta"] - params["mean"] * scale
        return _conv1x1_bn_fused(x_nchw, conv_w[:, :, 0, 0], scale, shift,
                                 crop=crop)
    # in_channels == out_channels: no conv; the crop is a pure slice (a view in
    # PyTorch) with zero compute, so there is nothing to put in a kernel.
    if crop:
        return x_nchw[:, :, _CROP_LO:_CROP_HI, _CROP_LO:_CROP_HI]
    return x_nchw


if __name__ == "__main__":
    key = jax.random.PRNGKey(0)
    k_x1, k_x2, k_x3, k_p, k_p2 = jax.random.split(key, 5)
    eps = 1e-5

    def ref_forward(x, params, in_ch, out_ch):
        # Pure-JAX reference in the ORIGINAL PyTorch order: conv+BN, then crop.
        y = x
        if in_ch != out_ch:
            w = params["conv_w"][:, :, 0, 0]
            scale = params["gamma"] / jnp.sqrt(params["var"] + eps)
            shift = params["beta"] - params["mean"] * scale
            y = jnp.einsum("nchw,oc->nohw", y, w)
            y = y * scale[None, :, None, None] + shift[None, :, None, None]
        if y.shape[3] < 16:
            y = y[:, :, 2:6, 2:6]
        return y

    # Case 1: 4->8 channels, spatial 8 (<16): fused in-kernel crop + conv + BN
    # (VPU contraction path). f32 end-to-end -> tight tolerance.
    in_ch, out_ch = 4, 8
    params = make_adjust_layer_params(in_ch, out_ch, k_p)
    x1 = jax.random.normal(k_x1, (2, in_ch, 8, 8), jnp.float32)
    out1 = jax.block_until_ready(adjust_layer_forward(x1, params, in_ch, out_ch))
    ref1 = ref_forward(x1, params, in_ch, out_ch)
    assert out1.shape == (2, out_ch, 4, 4), out1.shape
    assert jnp.allclose(out1, ref1, atol=1e-4, rtol=1e-4)

    # Case 2: 4->8 channels, spatial 16: conv + BN only, H*W=256 on lanes.
    x2 = jax.random.normal(k_x2, (2, in_ch, 16, 16), jnp.float32)
    out2 = jax.block_until_ready(adjust_layer_forward(x2, params, in_ch, out_ch))
    ref2 = ref_forward(x2, params, in_ch, out_ch)
    assert out2.shape == (2, out_ch, 16, 16), out2.shape
    assert jnp.allclose(out2, ref2, atol=1e-4, rtol=1e-4)

    # Case 3: wider channels (32->16) exercises the in-kernel MXU dot path.
    # Looser tolerance: default-precision f32 MXU matmul may use bf16 passes.
    in_ch3, out_ch3 = 32, 16
    params3 = make_adjust_layer_params(in_ch3, out_ch3, k_p2)
    x3 = jax.random.normal(k_x3, (2, in_ch3, 16, 16), jnp.float32)
    out3 = jax.block_until_ready(adjust_layer_forward(x3, params3, in_ch3, out_ch3))
    ref3 = ref_forward(x3, params3, in_ch3, out_ch3)
    assert out3.shape == (2, out_ch3, 16, 16), out3.shape
    assert jnp.allclose(out3, ref3, atol=2e-2, rtol=2e-2)

    # Case 4: in_channels == out_channels -> no conv, crop only (pure slice).
    x4 = jax.random.normal(k_x1, (2, in_ch, 8, 8), jnp.float32)
    out4 = jax.block_until_ready(adjust_layer_forward(x4, {}, in_ch, in_ch))
    assert jnp.array_equal(out4, x4[:, :, 2:6, 2:6])

    print("KERNEL_OK")
</pallas_src>

<mosaic_0001>
module attributes {stable_mosaic.version = 11 : i64} {
  func.func @kernel(%arg0: memref<2x4x8x8xf32, #tpu.memory_space<vmem>>, %arg1: memref<8x4xf32, #tpu.memory_space<vmem>>, %arg2: memref<8x1x1xf32, #tpu.memory_space<vmem>>, %arg3: memref<2x8x4x4xf32, #tpu.memory_space<vmem>>) attributes {dimension_semantics = [], scalar_prefetch = 0 : i64, scratch_operands = 0 : i64, tpu.core_type = #tpu.core_type<tc>} {
    %c0 = arith.constant 0 : index
    %c0_0 = arith.constant 0 : index
    %0 = vector.load %arg1[%c0, %c0_0] : memref<8x4xf32, #tpu.memory_space<vmem>>, vector<8x4xf32>
    %c0_1 = arith.constant 0 : index
    %c0_2 = arith.constant 0 : index
    %c0_3 = arith.constant 0 : index
    %1 = vector.load %arg2[%c0_1, %c0_2, %c0_3] : memref<8x1x1xf32, #tpu.memory_space<vmem>>, vector<8x1x1xf32>
    %c0_4 = arith.constant 0 : index
    %c0_5 = arith.constant 0 : index
    %c0_6 = arith.constant 0 : index
    %c0_7 = arith.constant 0 : index
    %2 = vector.load %arg0[%c0_4, %c0_5, %c0_6, %c0_7] : memref<2x4x8x8xf32, #tpu.memory_space<vmem>>, vector<1x4x8x8xf32>
    %3 = vector.shape_cast %2 : vector<1x4x8x8xf32> to vector<4x8x8xf32>
    %4 = vector.extract_strided_slice %3 {offsets = [0, 2, 2], sizes = [4, 4, 4], strides = [1, 1, 1]} : vector<4x8x8xf32> to vector<4x4x4xf32>
    %5 = vector.extract_strided_slice %0 {offsets = [0, 0], sizes = [8, 1], strides = [1, 1]} : vector<8x4xf32> to vector<8x1xf32>
    %6 = vector.shape_cast %5 : vector<8x1xf32> to vector<8x1x1xf32>
    %7 = vector.extract_strided_slice %4 {offsets = [0, 0, 0], sizes = [1, 4, 4], strides = [1, 1, 1]} : vector<4x4x4xf32> to vector<1x4x4xf32>
    %8 = vector.broadcast %6 : vector<8x1x1xf32> to vector<8x4x4xf32>
    %9 = vector.broadcast %7 : vector<1x4x4xf32> to vector<8x4x4xf32>
    %10 = arith.mulf %8, %9 : vector<8x4x4xf32>
    %11 = vector.extract_strided_slice %0 {offsets = [0, 1], sizes = [8, 1], strides = [1, 1]} : vector<8x4xf32> to vector<8x1xf32>
    %12 = vector.shape_cast %11 : vector<8x1xf32> to vector<8x1x1xf32>
    %13 = vector.extract_strided_slice %4 {offsets = [1, 0, 0], sizes = [1, 4, 4], strides = [1, 1, 1]} : vector<4x4x4xf32> to vector<1x4x4xf32>
    %14 = vector.broadcast %12 : vector<8x1x1xf32> to vector<8x4x4xf32>
    %15 = vector.broadcast %13 : vector<1x4x4xf32> to vector<8x4x4xf32>
    %16 = arith.mulf %14, %15 : vector<8x4x4xf32>
    %17 = arith.addf %10, %16 : vector<8x4x4xf32>
    %18 = vector.extract_strided_slice %0 {offsets = [0, 2], sizes = [8, 1], strides = [1, 1]} : vector<8x4xf32> to vector<8x1xf32>
    %19 = vector.shape_cast %18 : vector<8x1xf32> to vector<8x1x1xf32>
    %20 = vector.extract_strided_slice %4 {offsets = [2, 0, 0], sizes = [1, 4, 4], strides = [1, 1, 1]} : vector<4x4x4xf32> to vector<1x4x4xf32>
    %21 = vector.broadcast %19 : vector<8x1x1xf32> to vector<8x4x4xf32>
    %22 = vector.broadcast %20 : vector<1x4x4xf32> to vector<8x4x4xf32>
    %23 = arith.mulf %21, %22 : vector<8x4x4xf32>
    %24 = arith.addf %17, %23 : vector<8x4x4xf32>
    %25 = vector.extract_strided_slice %0 {offsets = [0, 3], sizes = [8, 1], strides = [1, 1]} : vector<8x4xf32> to vector<8x1xf32>
    %26 = vector.shape_cast %25 : vector<8x1xf32> to vector<8x1x1xf32>
    %27 = vector.extract_strided_slice %4 {offsets = [3, 0, 0], sizes = [1, 4, 4], strides = [1, 1, 1]} : vector<4x4x4xf32> to vector<1x4x4xf32>
    %28 = vector.broadcast %26 : vector<8x1x1xf32> to vector<8x4x4xf32>
    %29 = vector.broadcast %27 : vector<1x4x4xf32> to vector<8x4x4xf32>
    %30 = arith.mulf %28, %29 : vector<8x4x4xf32>
    %31 = arith.addf %24, %30 : vector<8x4x4xf32>
    %32 = vector.broadcast %1 : vector<8x1x1xf32> to vector<8x4x4xf32>
    %33 = arith.addf %31, %32 : vector<8x4x4xf32>
    %c0_8 = arith.constant 0 : index
    %c0_9 = arith.constant 0 : index
    %c0_10 = arith.constant 0 : index
    %c0_11 = arith.constant 0 : index
    %34 = vector.load %arg3[%c0_8, %c0_9, %c0_10, %c0_11] : memref<2x8x4x4xf32, #tpu.memory_space<vmem>>, vector<1x8x4x4xf32>
    %35 = vector.shape_cast %34 : vector<1x8x4x4xf32> to vector<8x4x4xf32>
    %36 = vector.shape_cast %33 : vector<8x4x4xf32> to vector<1x8x4x4xf32>
    tpu.vector_store %arg3[%c0_8, %c0_9, %c0_10, %c0_11], %36 {strides = array<i32>} : memref<2x8x4x4xf32, #tpu.memory_space<vmem>>, vector<1x8x4x4xf32>,
    %c1 = arith.constant 1 : index
    %c0_12 = arith.constant 0 : index
    %c0_13 = arith.constant 0 : index
    %c0_14 = arith.constant 0 : index
    %37 = vector.load %arg0[%c1, %c0_12, %c0_13, %c0_14] : memref<2x4x8x8xf32, #tpu.memory_space<vmem>>, vector<1x4x8x8xf32>
    %38 = vector.shape_cast %37 : vector<1x4x8x8xf32> to vector<4x8x8xf32>
    %39 = vector.extract_strided_slice %38 {offsets = [0, 2, 2], sizes = [4, 4, 4], strides = [1, 1, 1]} : vector<4x8x8xf32> to vector<4x4x4xf32>
    %40 = vector.extract_strided_slice %0 {offsets = [0, 0], sizes = [8, 1], strides = [1, 1]} : vector<8x4xf32> to vector<8x1xf32>
    %41 = vector.shape_cast %40 : vector<8x1xf32> to vector<8x1x1xf32>
    %42 = vector.extract_strided_slice %39 {offsets = [0, 0, 0], sizes = [1, 4, 4], strides = [1, 1, 1]} : vector<4x4x4xf32> to vector<1x4x4xf32>
    %43 = vector.broadcast %41 : vector<8x1x1xf32> to vector<8x4x4xf32>
    %44 = vector.broadcast %42 : vector<1x4x4xf32> to vector<8x4x4xf32>
    %45 = arith.mulf %43, %44 : vector<8x4x4xf32>
    %46 = vector.extract_strided_slice %0 {offsets = [0, 1], sizes = [8, 1], strides = [1, 1]} : vector<8x4xf32> to vector<8x1xf32>
    %47 = vector.shape_cast %46 : vector<8x1xf32> to vector<8x1x1xf32>
    %48 = vector.extract_strided_slice %39 {offsets = [1, 0, 0], sizes = [1, 4, 4], strides = [1, 1, 1]} : vector<4x4x4xf32> to vector<1x4x4xf32>
    %49 = vector.broadcast %47 : vector<8x1x1xf32> to vector<8x4x4xf32>
    %50 = vector.broadcast %48 : vector<1x4x4xf32> to vector<8x4x4xf32>
    %51 = arith.mulf %49, %50 : vector<8x4x4xf32>
    %52 = arith.addf %45, %51 : vector<8x4x4xf32>
    %53 = vector.extract_strided_slice %0 {offsets = [0, 2], sizes = [8, 1], strides = [1, 1]} : vector<8x4xf32> to vector<8x1xf32>
    %54 = vector.shape_cast %53 : vector<8x1xf32> to vector<8x1x1xf32>
    %55 = vector.extract_strided_slice %39 {offsets = [2, 0, 0], sizes = [1, 4, 4], strides = [1, 1, 1]} : vector<4x4x4xf32> to vector<1x4x4xf32>
    %56 = vector.broadcast %54 : vector<8x1x1xf32> to vector<8x4x4xf32>
    %57 = vector.broadcast %55 : vector<1x4x4xf32> to vector<8x4x4xf32>
    %58 = arith.mulf %56, %57 : vector<8x4x4xf32>
    %59 = arith.addf %52, %58 : vector<8x4x4xf32>
    %60 = vector.extract_strided_slice %0 {offsets = [0, 3], sizes = [8, 1], strides = [1, 1]} : vector<8x4xf32> to vector<8x1xf32>
    %61 = vector.shape_cast %60 : vector<8x1xf32> to vector<8x1x1xf32>
    %62 = vector.extract_strided_slice %39 {offsets = [3, 0, 0], sizes = [1, 4, 4], strides = [1, 1, 1]} : vector<4x4x4xf32> to vector<1x4x4xf32>
    %63 = vector.broadcast %61 : vector<8x1x1xf32> to vector<8x4x4xf32>
    %64 = vector.broadcast %62 : vector<1x4x4xf32> to vector<8x4x4xf32>
    %65 = arith.mulf %63, %64 : vector<8x4x4xf32>
    %66 = arith.addf %59, %65 : vector<8x4x4xf32>
    %67 = vector.broadcast %1 : vector<8x1x1xf32> to vector<8x4x4xf32>
    %68 = arith.addf %66, %67 : vector<8x4x4xf32>
    %c1_15 = arith.constant 1 : index
    %c0_16 = arith.constant 0 : index
    %c0_17 = arith.constant 0 : index
    %c0_18 = arith.constant 0 : index
    %69 = vector.load %arg3[%c1_15, %c0_16, %c0_17, %c0_18] : memref<2x8x4x4xf32, #tpu.memory_space<vmem>>, vector<1x8x4x4xf32>
    %70 = vector.shape_cast %69 : vector<1x8x4x4xf32> to vector<8x4x4xf32>
    %71 = vector.shape_cast %68 : vector<8x4x4xf32> to vector<1x8x4x4xf32>
    tpu.vector_store %arg3[%c1_15, %c0_16, %c0_17, %c0_18], %71 {strides = array<i32>} : memref<2x8x4x4xf32, #tpu.memory_space<vmem>>, vector<1x8x4x4xf32>,
    return
  }
}

</mosaic_0001>

<llo_original>
// kernel: tpu_custom_call.1
$region0: #{tpu_custom_call.1}
  #allocation0 [shape = 'u32[]', space=smem, size = 0x4, offset = 0x4, fixed_abs, tag = 'smem constant byte address 0x4 - core index']
  #allocation1 [shape = 'u32[144,128]{1,0:T(1,128)}', space=vmem, size = 0x12000, scoped, tag = 'internal scratch']
  %s0 = inlined_call_operand.hbm [shape: f32[2,4,8,8], index: 0, kind: input, shape index: {}]
  %s1 = inlined_call_operand.vmem [shape: f32[8,4], index: 1, kind: input, shape index: {}]
  %s2 = inlined_call_operand.vmem [shape: f32[8,1,1], index: 2, kind: input, shape index: {}]
  %s3 = inlined_call_operand.vmem [shape: f32[2,8,4,4], index: 3, kind: output, shape index: {}]
  %s4 = sld [smem:[#allocation0]]
  $region26: #{tpu_custom_call.1} parent=0
    _
  %s6 = ssub.s32 1, %s4
  %s7 = scalar_select 0, %s6, %s4
  $region1: #{tpu_custom_call.1} parent=0
    #allocation2 [shape = 'u8[32768]{0}', space=vmem, size = 0x8000, scoped, tag = 'input window, operand 0, single buffered']
    #allocation3 [shape = 's32[1]{0}', space=sflag, size = 0x4, scoped, tag = 'scoped memory for tpu_custom_call.1']
    %8 = vsyncpa [#allocation3], 0
    // Predicated region
    $region2: #{tpu_custom_call.1} parent=1 // pred_check
      _
    $region3: #{tpu_custom_call.1} parent=1 // pred_check_branch
      %10 = sbr.rel (0) target = $region5
    $region4: #{tpu_custom_call.1} parent=1 // pred_region
      %s12 = ssub.s32 1024, 1024
      %13 = vsyncadd [#allocation3], %s12
      %s14 = sshll.u32 [#allocation2], 4
      %s15 = int_to_ptr.vmem [resolvable:$true] %s14
      %20 = dma.hbm_to_vmem [thread:$0]  %s0, 1024, %s15, [#allocation3], 128, 128, 8
    $region5: #{tpu_custom_call.1} parent=1 // pred_fallthru
      _
    // Predicated region
    $region6: #{tpu_custom_call.1} parent=1 // pred_check
      _
    $region7: #{tpu_custom_call.1} parent=1 // pred_check_branch
      %22 = sbr.rel (0) target = $region9
    $region8: #{tpu_custom_call.1} parent=1 // pred_region
      _
    $region9: #{tpu_custom_call.1} parent=1 // pred_fallthru
      _
    // Predicated region
    $region10: #{tpu_custom_call.1} parent=1 // pred_check
      _
    $region11: #{tpu_custom_call.1} parent=1 // pred_check_branch
      %24 = sbr.rel (0) target = $region13
    $region12: #{tpu_custom_call.1} parent=1 // pred_region
      _
    $region13: #{tpu_custom_call.1} parent=1 // pred_fallthru
      _
    // Predicated region
    $region14: #{tpu_custom_call.1} parent=1 // pred_check
      _
    $region15: #{tpu_custom_call.1} parent=1 // pred_check_branch
      %26 = sbr.rel (0) target = $region17
    $region16: #{tpu_custom_call.1} parent=1 // pred_region
      %27 = dma.done [#allocation3], 1024
    $region17: #{tpu_custom_call.1} parent=1 // pred_fallthru
      _
    %v28 = vld [vmem:[%s1] sm:$0xff]
    %v29 = vld [vmem:[%s2] sm:$0x1]
    %v30 = vld [vmem:[%s2 + $0x1] sm:$0x1]
    %v31 = vld [vmem:[%s2 + $0x2] sm:$0x1]
    %v32 = vld [vmem:[%s2 + $0x3] sm:$0x1]
    %v33 = vld [vmem:[%s2 + $0x4] sm:$0x1]
    %v34 = vld [vmem:[%s2 + $0x5] sm:$0x1]
    %v35 = vld [vmem:[%s2 + $0x6] sm:$0x1]
    %v36 = vld [vmem:[%s2 + $0x7] sm:$0x1]
    %v37 = vld [vmem:[#allocation2] sm:$0xff]
    %v38 = vld [vmem:[#allocation2 + $0x8] sm:$0xff]
    %v39 = vld [vmem:[#allocation2 + $0x10] sm:$0xff]
    %v40 = vld [vmem:[#allocation2 + $0x18] sm:$0xff]
    %v42 = vcombine.high %v28, %v28
    %v44 = vunpack.c.l.s4 1966171168
    %v45 = vunpack.c.0.s8 %v44
    %v46 = vlaneseq
    %v47 = vshrl.u32 %v46, 7
    %v48 = vsub.s32 %v45, %v47
    %v49 = vrot.slane %v28, %v48
    %v51 = vunpack.c.l.s4 1966171168
    %v52 = vunpack.c.0.s8 %v51
    %v53 = vlaneseq
    %v54 = vshrl.u32 %v53, 7
    %v55 = vsub.s32 %v52, %v54
    %v56 = vrot.slane %v42, %v55
    %v57 = vcombine.high %v49, %v49
    %v58 = vcombine.high %v56, %v56
    %v60 = vunpack.c.l.s4 1966171168
    %v61 = vunpack.c.0.s8 %v60
    %v62 = vlaneseq
    %v63 = vshrl.u32 %v62, 7
    %v64 = vsub.s32 %v61, %v63
    %v65 = vrot.slane %v49, %v64
    %v67 = vunpack.c.l.s4 1966171168
    %v68 = vunpack.c.0.s8 %v67
    %v69 = vlaneseq
    %v70 = vshrl.u32 %v69, 7
    %v71 = vsub.s32 %v68, %v70
    %v72 = vrot.slane %v56, %v71
    %v74 = vunpack.c.l.s4 1966171168
    %v75 = vunpack.c.0.s8 %v74
    %v76 = vlaneseq
    %v77 = vshrl.u32 %v76, 7
    %v78 = vsub.s32 %v75, %v77
    %v79 = vrot.slane %v57, %v78
    %v81 = vunpack.c.l.s4 1966171168
    %v82 = vunpack.c.0.s8 %v81
    %v83 = vlaneseq
    %v84 = vshrl.u32 %v83, 7
    %v85 = vsub.s32 %v82, %v84
    %v86 = vrot.slane %v58, %v85
    %v87 = vcombine.high %v65, %v65
    %v88 = vcombine.high %v72, %v72
    %v89 = vcombine.high %v79, %v79
    %v90 = vcombine.high %v86, %v86
    %v91 = vlaneseq
    %v92 = vshrl.u32 %v91, 7
    %v93 = vsub.s32 0, %v92
    %v94 = vrot.slane %v65, %v93
    %v95 = vlaneseq
    %v96 = vshrl.u32 %v95, 7
    %v97 = vsub.s32 0, %v96
    %v98 = vrot.slane %v79, %v97
    %v99 = vlaneseq
    %v100 = vshrl.u32 %v99, 7
    %v101 = vsub.s32 0, %v100
    %v102 = vrot.slane %v87, %v101
    %v103 = vlaneseq
    %v104 = vshrl.u32 %v103, 7
    %v105 = vsub.s32 0, %v104
    %v106 = vrot.slane %v89, %v105
    %v107 = vlaneseq
    %v108 = vshrl.u32 %v107, 7
    %v109 = vsub.s32 0, %v108
    %v110 = vrot.slane %v72, %v109
    %v111 = vlaneseq
    %v112 = vshrl.u32 %v111, 7
    %v113 = vsub.s32 0, %v112
    %v114 = vrot.slane %v86, %v113
    %v115 = vlaneseq
    %v116 = vshrl.u32 %v115, 7
    %v117 = vsub.s32 0, %v116
    %v118 = vrot.slane %v88, %v117
    %v119 = vlaneseq
    %v120 = vshrl.u32 %v119, 7
    %v121 = vsub.s32 0, %v120
    %v122 = vrot.slane %v90, %v121
    %123 = vset.pattern.permute.xlu0 0
    %124 = vperm.xlu0 %123, %v94
    %v125 = vpop.permute.xlu0 %124
    %127 = vset.pattern.permute.xlu0 0
    %128 = vperm.xlu0 %127, %v98
    %v129 = vpop.permute.xlu0 %128
    %131 = vset.pattern.permute.xlu0 0
    %132 = vperm.xlu0 %131, %v102
    %v133 = vpop.permute.xlu0 %132
    %135 = vset.pattern.permute.xlu0 0
    %136 = vperm.xlu0 %135, %v106
    %v137 = vpop.permute.xlu0 %136
    %139 = vset.pattern.permute.xlu0 0
    %140 = vperm.xlu0 %139, %v110
    %v141 = vpop.permute.xlu0 %140
    %143 = vset.pattern.permute.xlu0 0
    %144 = vperm.xlu0 %143, %v114
    %v145 = vpop.permute.xlu0 %144
    %147 = vset.pattern.permute.xlu0 0
    %148 = vperm.xlu0 %147, %v118
    %v149 = vpop.permute.xlu0 %148
    %151 = vset.pattern.permute.xlu0 0
    %152 = vperm.xlu0 %151, %v122
    %v153 = vpop.permute.xlu0 %152
    %v155 = vmul.f32 %v125, %v37
    %v156 = vmul.f32 %v129, %v37
    %v157 = vmul.f32 %v133, %v37
    %v158 = vmul.f32 %v137, %v37
    %v159 = vmul.f32 %v141, %v37
    %v160 = vmul.f32 %v145, %v37
    %v161 = vmul.f32 %v149, %v37
    %v162 = vmul.f32 %v153, %v37
    %163 = vset.pattern.permute.xlu0 1
    %164 = vperm.xlu0 %163, %v94
    %v165 = vpop.permute.xlu0 %164
    %167 = vset.pattern.permute.xlu0 1
    %168 = vperm.xlu0 %167, %v98
    %v169 = vpop.permute.xlu0 %168
    %171 = vset.pattern.permute.xlu0 1
    %172 = vperm.xlu0 %171, %v102
    %v173 = vpop.permute.xlu0 %172
    %175 = vset.pattern.permute.xlu0 1
    %176 = vperm.xlu0 %175, %v106
    %v177 = vpop.permute.xlu0 %176
    %179 = vset.pattern.permute.xlu0 1
    %180 = vperm.xlu0 %179, %v110
    %v181 = vpop.permute.xlu0 %180
    %183 = vset.pattern.permute.xlu0 1
    %184 = vperm.xlu0 %183, %v114
    %v185 = vpop.permute.xlu0 %184
    %187 = vset.pattern.permute.xlu0 1
    %188 = vperm.xlu0 %187, %v118
    %v189 = vpop.permute.xlu0 %188
    %191 = vset.pattern.permute.xlu0 1
    %192 = vperm.xlu0 %191, %v122
    %v193 = vpop.permute.xlu0 %192
    %v195 = vmul.f32 %v165, %v38
    %v196 = vmul.f32 %v169, %v38
    %v197 = vmul.f32 %v173, %v38
    %v198 = vmul.f32 %v177, %v38
    %v199 = vmul.f32 %v181, %v38
    %v200 = vmul.f32 %v185, %v38
    %v201 = vmul.f32 %v189, %v38
    %v202 = vmul.f32 %v193, %v38
    %v203 = vadd.f32 %v155, %v195
    %v204 = vadd.f32 %v156, %v196
    %v205 = vadd.f32 %v157, %v197
    %v206 = vadd.f32 %v158, %v198
    %v207 = vadd.f32 %v159, %v199
    %v208 = vadd.f32 %v160, %v200
    %v209 = vadd.f32 %v161, %v201
    %v210 = vadd.f32 %v162, %v202
    %211 = vset.pattern.permute.xlu0 2
    %212 = vperm.xlu0 %211, %v94
    %v213 = vpop.permute.xlu0 %212
    %215 = vset.pattern.permute.xlu0 2
    %216 = vperm.xlu0 %215, %v98
    %v217 = vpop.permute.xlu0 %216
    %219 = vset.pattern.permute.xlu0 2
    %220 = vperm.xlu0 %219, %v102
    %v221 = vpop.permute.xlu0 %220
    %223 = vset.pattern.permute.xlu0 2
    %224 = vperm.xlu0 %223, %v106
    %v225 = vpop.permute.xlu0 %224
    %227 = vset.pattern.permute.xlu0 2
    %228 = vperm.xlu0 %227, %v110
    %v229 = vpop.permute.xlu0 %228
    %231 = vset.pattern.permute.xlu0 2
    %232 = vperm.xlu0 %231, %v114
    %v233 = vpop.permute.xlu0 %232
    %235 = vset.pattern.permute.xlu0 2
    %236 = vperm.xlu0 %235, %v118
    %v237 = vpop.permute.xlu0 %236
    %239 = vset.pattern.permute.xlu0 2
    %240 = vperm.xlu0 %239, %v122
    %v241 = vpop.permute.xlu0 %240
    %v243 = vmul.f32 %v213, %v39
    %v244 = vmul.f32 %v217, %v39
    %v245 = vmul.f32 %v221, %v39
    %v246 = vmul.f32 %v225, %v39
    %v247 = vmul.f32 %v229, %v39
    %v248 = vmul.f32 %v233, %v39
    %v249 = vmul.f32 %v237, %v39
    %v250 = vmul.f32 %v241, %v39
    %v251 = vadd.f32 %v203, %v243
    %v252 = vadd.f32 %v204, %v244
    %v253 = vadd.f32 %v205, %v245
    %v254 = vadd.f32 %v206, %v246
    %v255 = vadd.f32 %v207, %v247
    %v256 = vadd.f32 %v208, %v248
    %v257 = vadd.f32 %v209, %v249
    %v258 = vadd.f32 %v210, %v250
    %259 = vset.pattern.permute.xlu0 3
    %260 = vperm.xlu0 %259, %v94
    %v261 = vpop.permute.xlu0 %260
    %263 = vset.pattern.permute.xlu0 3
    %264 = vperm.xlu0 %263, %v98
    %v265 = vpop.permute.xlu0 %264
    %267 = vset.pattern.permute.xlu0 3
    %268 = vperm.xlu0 %267, %v102
    %v269 = vpop.permute.xlu0 %268
    %271 = vset.pattern.permute.xlu0 3
    %272 = vperm.xlu0 %271, %v106
    %v273 = vpop.permute.xlu0 %272
    %275 = vset.pattern.permute.xlu0 3
    %276 = vperm.xlu0 %275, %v110
    %v277 = vpop.permute.xlu0 %276
    %279 = vset.pattern.permute.xlu0 3
    %280 = vperm.xlu0 %279, %v114
    %v281 = vpop.permute.xlu0 %280
    %283 = vset.pattern.permute.xlu0 3
    %284 = vperm.xlu0 %283, %v118
    %v285 = vpop.permute.xlu0 %284
    %287 = vset.pattern.permute.xlu0 3
    %288 = vperm.xlu0 %287, %v122
    %v289 = vpop.permute.xlu0 %288
    %v291 = vmul.f32 %v261, %v40
    %v292 = vmul.f32 %v265, %v40
    %v293 = vmul.f32 %v269, %v40
    %v294 = vmul.f32 %v273, %v40
    %v295 = vmul.f32 %v277, %v40
    %v296 = vmul.f32 %v281, %v40
    %v297 = vmul.f32 %v285, %v40
    %v298 = vmul.f32 %v289, %v40
    %v299 = vadd.f32 %v251, %v291
    %v300 = vadd.f32 %v252, %v292
    %v301 = vadd.f32 %v253, %v293
    %v302 = vadd.f32 %v254, %v294
    %v303 = vadd.f32 %v255, %v295
    %v304 = vadd.f32 %v256, %v296
    %v305 = vadd.f32 %v257, %v297
    %v306 = vadd.f32 %v258, %v298
    %v315 = vlaneseq
    %v316 = vshrl.u32 %v315, 7
    %v317 = vsub.s32 0, %v316
    %v318 = vrot.slane %v29, %v317
    %v319 = vlaneseq
    %v320 = vshrl.u32 %v319, 7
    %v321 = vsub.s32 0, %v320
    %v322 = vrot.slane %v30, %v321
    %v323 = vlaneseq
    %v324 = vshrl.u32 %v323, 7
    %v325 = vsub.s32 0, %v324
    %v326 = vrot.slane %v31, %v325
    %v327 = vlaneseq
    %v328 = vshrl.u32 %v327, 7
    %v329 = vsub.s32 0, %v328
    %v330 = vrot.slane %v32, %v329
    %v331 = vlaneseq
    %v332 = vshrl.u32 %v331, 7
    %v333 = vsub.s32 0, %v332
    %v334 = vrot.slane %v33, %v333
    %v335 = vlaneseq
    %v336 = vshrl.u32 %v335, 7
    %v337 = vsub.s32 0, %v336
    %v338 = vrot.slane %v34, %v337
    %v339 = vlaneseq
    %v340 = vshrl.u32 %v339, 7
    %v341 = vsub.s32 0, %v340
    %v342 = vrot.slane %v35, %v341
    %v343 = vlaneseq
    %v344 = vshrl.u32 %v343, 7
    %v345 = vsub.s32 0, %v344
    %v346 = vrot.slane %v36, %v345
    %347 = vset.pattern.permute.xlu0 0
    %348 = vperm.xlu0 %347, %v318
    %v349 = vpop.permute.xlu0 %348
    %351 = vset.pattern.permute.xlu0 0
    %352 = vperm.xlu0 %351, %v322
    %v353 = vpop.permute.xlu0 %352
    %355 = vset.pattern.permute.xlu0 0
    %356 = vperm.xlu0 %355, %v326
    %v357 = vpop.permute.xlu0 %356
    %359 = vset.pattern.permute.xlu0 0
    %360 = vperm.xlu0 %359, %v330
    %v361 = vpop.permute.xlu0 %360
    %363 = vset.pattern.permute.xlu0 0
    %364 = vperm.xlu0 %363, %v334
    %v365 = vpop.permute.xlu0 %364
    %367 = vset.pattern.permute.xlu0 0
    %368 = vperm.xlu0 %367, %v338
    %v369 = vpop.permute.xlu0 %368
    %371 = vset.pattern.permute.xlu0 0
    %372 = vperm.xlu0 %371, %v342
    %v373 = vpop.permute.xlu0 %372
    %375 = vset.pattern.permute.xlu0 0
    %376 = vperm.xlu0 %375, %v346
    %v377 = vpop.permute.xlu0 %376
    %v379 = vadd.f32 %v299, %v349
    %v380 = vadd.f32 %v300, %v353
    %v381 = vadd.f32 %v301, %v357
    %v382 = vadd.f32 %v302, %v361
    %v383 = vadd.f32 %v303, %v365
    %v384 = vadd.f32 %v304, %v369
    %v385 = vadd.f32 %v305, %v373
    %v386 = vadd.f32 %v306, %v377
    %395 = vrot.lane.b32.xlu0 %v379, 126
    %v396 = vpop.permute.xlu0 %395
    %397 = vrot.lane.b32.xlu0 %v380, 126
    %v398 = vpop.permute.xlu0 %397
    %399 = vrot.lane.b32.xlu0 %v381, 126
    %v400 = vpop.permute.xlu0 %399
    %401 = vrot.lane.b32.xlu0 %v382, 126
    %v402 = vpop.permute.xlu0 %401
    %403 = vrot.lane.b32.xlu0 %v383, 126
    %v404 = vpop.permute.xlu0 %403
    %405 = vrot.lane.b32.xlu0 %v384, 126
    %v406 = vpop.permute.xlu0 %405
    %407 = vrot.lane.b32.xlu0 %v385, 126
    %v408 = vpop.permute.xlu0 %407
    %409 = vrot.lane.b32.xlu0 %v386, 126
    %v410 = vpop.permute.xlu0 %409
    %vm419 = vcmask 29698
    %420 = vst.msk [vmem:[%s3 - $0x2] sm:$0x3c] %vm419, %v396
    %421 = vst.msk [vmem:[%s3 + $0x2] sm:$0x3c] %vm419, %v398
    %422 = vst.msk [vmem:[%s3 + $0x6] sm:$0x3c] %vm419, %v400
    %423 = vst.msk [vmem:[%s3 + $0xa] sm:$0x3c] %vm419, %v402
    %424 = vst.msk [vmem:[%s3 + $0xe] sm:$0x3c] %vm419, %v404
    %425 = vst.msk [vmem:[%s3 + $0x12] sm:$0x3c] %vm419, %v406
    %426 = vst.msk [vmem:[%s3 + $0x16] sm:$0x3c] %vm419, %v408
    %427 = vst.msk [vmem:[%s3 + $0x1a] sm:$0x3c] %vm419, %v410
    %s428 = scalar_lea.vmem [#allocation2], 32
    %v429 = vld [vmem:[%s428] sm:$0xff]
    %v430 = vld [vmem:[%s428 + $0x8] sm:$0xff]
    %v431 = vld [vmem:[%s428 + $0x10] sm:$0xff]
    %v432 = vld [vmem:[%s428 + $0x18] sm:$0xff]
    %v433 = vmul.f32 %v125, %v429
    %v434 = vmul.f32 %v129, %v429
    %v435 = vmul.f32 %v133, %v429
    %v436 = vmul.f32 %v137, %v429
    %v437 = vmul.f32 %v141, %v429
    %v438 = vmul.f32 %v145, %v429
    %v439 = vmul.f32 %v149, %v429
    %v440 = vmul.f32 %v153, %v429
    %v441 = vmul.f32 %v165, %v430
    %v442 = vmul.f32 %v169, %v430
    %v443 = vmul.f32 %v173, %v430
    %v444 = vmul.f32 %v177, %v430
    %v445 = vmul.f32 %v181, %v430
    %v446 = vmul.f32 %v185, %v430
    %v447 = vmul.f32 %v189, %v430
    %v448 = vmul.f32 %v193, %v430
    %v449 = vadd.f32 %v433, %v441
    %v450 = vadd.f32 %v434, %v442
    %v451 = vadd.f32 %v435, %v443
    %v452 = vadd.f32 %v436, %v444
    %v453 = vadd.f32 %v437, %v445
    %v454 = vadd.f32 %v438, %v446
    %v455 = vadd.f32 %v439, %v447
    %v456 = vadd.f32 %v440, %v448
    %v457 = vmul.f32 %v213, %v431
    %v458 = vmul.f32 %v217, %v431
    %v459 = vmul.f32 %v221, %v431
    %v460 = vmul.f32 %v225, %v431
    %v461 = vmul.f32 %v229, %v431
    %v462 = vmul.f32 %v233, %v431
    %v463 = vmul.f32 %v237, %v431
    %v464 = vmul.f32 %v241, %v431
    %v465 = vadd.f32 %v449, %v457
    %v466 = vadd.f32 %v450, %v458
    %v467 = vadd.f32 %v451, %v459
    %v468 = vadd.f32 %v452, %v460
    %v469 = vadd.f32 %v453, %v461
    %v470 = vadd.f32 %v454, %v462
    %v471 = vadd.f32 %v455, %v463
    %v472 = vadd.f32 %v456, %v464
    %v473 = vmul.f32 %v261, %v432
    %v474 = vmul.f32 %v265, %v432
    %v475 = vmul.f32 %v269, %v432
    %v476 = vmul.f32 %v273, %v432
    %v477 = vmul.f32 %v277, %v432
    %v478 = vmul.f32 %v281, %v432
    %v479 = vmul.f32 %v285, %v432
    %v480 = vmul.f32 %v289, %v432
    %v481 = vadd.f32 %v465, %v473
    %v482 = vadd.f32 %v466, %v474
    %v483 = vadd.f32 %v467, %v475
    %v484 = vadd.f32 %v468, %v476
    %v485 = vadd.f32 %v469, %v477
    %v486 = vadd.f32 %v470, %v478
    %v487 = vadd.f32 %v471, %v479
    %v488 = vadd.f32 %v472, %v480
    %v489 = vadd.f32 %v481, %v349
    %v490 = vadd.f32 %v482, %v353
    %v491 = vadd.f32 %v483, %v357
    %v492 = vadd.f32 %v484, %v361
    %v493 = vadd.f32 %v485, %v365
    %v494 = vadd.f32 %v486, %v369
    %v495 = vadd.f32 %v487, %v373
    %v496 = vadd.f32 %v488, %v377
    %505 = vrot.lane.b32.xlu0 %v489, 126
    %v506 = vpop.permute.xlu0 %505
    %507 = vrot.lane.b32.xlu0 %v490, 126
    %v508 = vpop.permute.xlu0 %507
    %509 = vrot.lane.b32.xlu0 %v491, 126
    %v510 = vpop.permute.xlu0 %509
    %511 = vrot.lane.b32.xlu0 %v492, 126
    %v512 = vpop.permute.xlu0 %511
    %513 = vrot.lane.b32.xlu0 %v493, 126
    %v514 = vpop.permute.xlu0 %513
    %515 = vrot.lane.b32.xlu0 %v494, 126
    %v516 = vpop.permute.xlu0 %515
    %517 = vrot.lane.b32.xlu0 %v495, 126
    %v518 = vpop.permute.xlu0 %517
    %519 = vrot.lane.b32.xlu0 %v496, 126
    %v520 = vpop.permute.xlu0 %519
    %s529 = scalar_lea.vmem %s3, 32
    %530 = vst.msk [vmem:[%s529 - $0x2] sm:$0x3c] %vm419, %v506
    %531 = vst.msk [vmem:[%s529 + $0x2] sm:$0x3c] %vm419, %v508
    %532 = vst.msk [vmem:[%s529 + $0x6] sm:$0x3c] %vm419, %v510
    %533 = vst.msk [vmem:[%s529 + $0xa] sm:$0x3c] %vm419, %v512
    %534 = vst.msk [vmem:[%s529 + $0xe] sm:$0x3c] %vm419, %v514
    %535 = vst.msk [vmem:[%s529 + $0x12] sm:$0x3c] %vm419, %v516
    %536 = vst.msk [vmem:[%s529 + $0x16] sm:$0x3c] %vm419, %v518
    %537 = vst.msk [vmem:[%s529 + $0x1a] sm:$0x3c] %vm419, %v520
    // Predicated region
    $region18: #{tpu_custom_call.1} parent=1 // pred_check
      _
    $region19: #{tpu_custom_call.1} parent=1 // pred_check_branch
      %539 = sbr.rel (0) target = $region21
    $region20: #{tpu_custom_call.1} parent=1 // pred_region
      _
    $region21: #{tpu_custom_call.1} parent=1 // pred_fallthru
      _
    // Predicated region
    $region22: #{tpu_custom_call.1} parent=1 // pred_check
      _
    $region23: #{tpu_custom_call.1} parent=1 // pred_check_branch
      %541 = sbr.rel (0) target = $region25
    $region24: #{tpu_custom_call.1} parent=1 // pred_region
      _
    $region25: #{tpu_custom_call.1} parent=1 // pred_fallthru
      _
    %542 = vsyncpa [#allocation3], 1

</llo_original>
